<compile_context>
chip_gen: v7x
topology: tpu7x:2x2x1
jax: 0.10.0
libtpu: 0.0.40
codegen_flags: <defaults>
</compile_context>

<pallas_src>
import functools

import jax
import jax.numpy as jnp
from jax import lax
from jax.experimental import pallas as pl
from jax.experimental.pallas import tpu as pltpu

_H1, _H2 = 256, 128

_VMEM_BUDGET = 20 * 1024 * 1024   # target resident bytes (tiles + temps)
_VMEM_LIMIT = 40 * 1024 * 1024    # scoped VMEM limit handed to Mosaic


def _round_up(x: int, m: int) -> int:
    return (x + m - 1) // m * m


def _cdiv(a: int, b: int) -> int:
    return (a + b - 1) // b


def _pick_tile(B: int, D: int, tile_b: int) -> int:
    """Batch-tile size: as large as the VMEM budget allows, multiple of 128
    (lane-dense output stores) when possible, shrunk for tiny batches."""
    # Rough per-row VMEM bytes: double-buffered f32 x tile, in-kernel bf16
    # copy of x, f32+bf16 h1, f32+bf16(+transposed) h2, plus slack.
    per_row = 8 * D + 2 * D + 6 * _H1 + 10 * _H2 + 64
    # Weight/bias blocks (double-buffered by the pipeline even though their
    # index_map is constant).
    weights = 2 * 2 * (D * _H1 + _H1 * _H2 + _H2) + 2 * 4 * (_H1 + _H2 + 1)
    cap = max((_VMEM_BUDGET - weights) // per_row, 8)
    tb = max(min(tile_b, cap), 8)
    tb = min(tb, _round_up(B, 8))
    if tb >= 128:
        tb = (tb // 128) * 128
    else:
        tb = _round_up(tb, 8)
    return tb


def _mlp_kernel(x_ref, w1_ref, b1_ref, w2_ref, b2_ref, w3_ref, b3_ref, o_ref):
    """Fused MLP forward for one batch tile.

    BatchNorm1d (eval) is pre-folded into the linear weights/biases by the
    wrapper and Dropout(p=0.0) is the identity, so this computes
        sigmoid( relu( relu(x@W1'+b1') @ W2' + b2' ) @ w3 + b3 )
    The result is produced transposed, shape (1, tile_b), so the output store
    is lane-dense (full-width vst instead of masked 1-lane stores).
    """
    # In-kernel cast: x arrives in its original f32 HBM layout (no wrapper
    # pad/cast pass); the bf16 cast is a cheap VPU op.
    x = x_ref[...].astype(w1_ref.dtype)                               # (tb, D)

    # Linear 1 (+ folded BN1) + ReLU
    h1 = jnp.dot(x, w1_ref[...], preferred_element_type=jnp.float32)
    h1 = jnp.maximum(h1 + b1_ref[...], 0.0)                           # (tb, 256) f32

    # Linear 2 (+ folded BN2) + ReLU
    h2 = jnp.dot(h1.astype(w2_ref.dtype), w2_ref[...],
                 preferred_element_type=jnp.float32)
    h2 = jnp.maximum(h2 + b2_ref[...], 0.0)                           # (tb, 128) f32

    # Linear 3 + sigmoid, computed transposed for a lane-dense store.
    # Contracting dim 1 of both operands (bf16) lets Mosaic fold the h2
    # transpose into the MXU feed instead of an explicit f32 XLU transpose.
    z = lax.dot_general(w3_ref[...], h2.astype(w3_ref.dtype),
                        dimension_numbers=(((1,), (1,)), ((), ())),
                        preferred_element_type=jnp.float32)           # (1, tb)
    o_ref[0] = jax.nn.sigmoid(z + b3_ref[...])                        # (1, tb)


@functools.partial(jax.jit, static_argnames=("tile_b", "compute_dtype"))
def mlp_forward(x, params, *, tile_b=4096, compute_dtype=jnp.bfloat16):
    """x: (B, D) float32 -> (B, 1) float32 probabilities (eval mode)."""
    B, D = x.shape
    (w1, b1, s1, t1, w2, b2, s2, t2, w3, b3) = params

    # ---- fold BatchNorm1d (eval) into the preceding Linear, in f32 ----
    w1f = w1 * s1[None, :]
    b1f = b1 * s1 + t1
    w2f = w2 * s2[None, :]
    b2f = b2 * s2 + t2

    # ---- cast only the (tiny) weights; x is passed through untouched ----
    w1c = w1f.astype(compute_dtype)                      # (D, 256)
    w2c = w2f.astype(compute_dtype)                      # (256, 128)
    w3r = w3.reshape(1, _H2).astype(compute_dtype)       # (1, 128)
    b1r = b1f.reshape(1, _H1).astype(jnp.float32)
    b2r = b2f.reshape(1, _H2).astype(jnp.float32)
    b3r = b3.reshape(1, 1).astype(jnp.float32)

    # ---- tiling: big batch tiles, no batch padding (ragged tail block) ----
    tb = _pick_tile(B, D, tile_b)
    n_tiles = _cdiv(B, tb)

    const = lambda shape: pl.BlockSpec(shape, lambda i: (0, 0))

    out = pl.pallas_call(
        _mlp_kernel,
        out_shape=jax.ShapeDtypeStruct((n_tiles, 1, tb), jnp.float32),
        grid_spec=pltpu.PrefetchScalarGridSpec(
            num_scalar_prefetch=0,
            grid=(n_tiles,),
            in_specs=[
                pl.BlockSpec((tb, D), lambda i: (i, 0)),      # x tile (f32)
                const((D, _H1)), const((1, _H1)),             # W1', b1'
                const((_H1, _H2)), const((1, _H2)),           # W2', b2'
                const((1, _H2)), const((1, 1)),               # w3 row, b3
            ],
            out_specs=pl.BlockSpec((1, 1, tb), lambda i: (i, 0, 0)),
        ),
        compiler_params=pltpu.CompilerParams(
            dimension_semantics=("parallel",),
            vmem_limit_bytes=_VMEM_LIMIT),
    )(x, w1c, b1r, w2c, b2r, w3r, b3r)

    # (n_tiles, 1, tb) -> (n_tiles*tb, 1) -> strip ragged-tail garbage rows.
    return out.reshape(n_tiles * tb, 1)[:B]


def init_params(key, input_size):
    """Deterministic synthetic parameters matching torch.nn shapes."""
    H1, H2, H3 = 256, 128, 1
    eps = 1e-5
    ks = jax.random.split(key, 12)

    def linear(kw, kb, fan_in, fan_out):
        bound = 1.0 / jnp.sqrt(fan_in)
        w = jax.random.uniform(kw, (fan_in, fan_out), jnp.float32, -bound, bound)
        b = jax.random.uniform(kb, (fan_out,), jnp.float32, -bound, bound)
        return w, b

    w1, b1 = linear(ks[0], ks[1], input_size, H1)
    w2, b2 = linear(ks[2], ks[3], H1, H2)
    w3, b3 = linear(ks[4], ks[5], H2, H3)

    def bn(kg, kb, n):
        # Deterministic non-trivial BN params + running stats (eval mode).
        gamma = 1.0 + 0.1 * jax.random.normal(kg, (n,), jnp.float32)
        beta = 0.1 * jax.random.normal(kb, (n,), jnp.float32)
        running_mean = jnp.zeros((n,), jnp.float32)
        running_var = jnp.ones((n,), jnp.float32)
        scale = gamma / jnp.sqrt(running_var + eps)
        shift = beta - running_mean * scale
        return scale, shift

    s1, t1 = bn(ks[6], ks[7], H1)
    s2, t2 = bn(ks[8], ks[9], H2)

    return (w1, b1, s1, t1, w2, b2, s2, t2, w3, b3)


def mlp_reference(x, params):
    """Pure-JAX f32 reference for correctness checking."""
    (w1, b1, s1, t1, w2, b2, s2, t2, w3, b3) = params
    h = jnp.maximum((x @ w1 + b1) * s1 + t1, 0.0)
    h = jnp.maximum((h @ w2 + b2) * s2 + t2, 0.0)
    return jax.nn.sigmoid(h @ w3 + b3)


if __name__ == "__main__":
    key = jax.random.PRNGKey(0)
    k_x, k_p, k_x2 = jax.random.split(key, 3)

    INPUT_SIZE = 32
    params = init_params(k_p, INPUT_SIZE)

    # --- small batch ---
    B = 8
    x = jax.random.normal(k_x, (B, INPUT_SIZE), jnp.float32)
    ref = mlp_reference(x, params)

    # Exact-precision path (f32 MXU inputs).
    out_f32 = jax.block_until_ready(
        mlp_forward(x, params, compute_dtype=jnp.float32))
    assert out_f32.shape == (B, 1), out_f32.shape
    assert jnp.allclose(out_f32, ref, atol=1e-5, rtol=1e-5), (out_f32, ref)

    # Default fast path (bf16 MXU inputs, f32 accumulate + f32 epilogue).
    out_bf16 = jax.block_until_ready(mlp_forward(x, params))
    assert out_bf16.shape == (B, 1), out_bf16.shape
    assert jnp.allclose(out_bf16, ref, atol=2e-2, rtol=2e-2), (out_bf16, ref)

    # --- ragged multi-tile batch (no batch padding in the wrapper): 200 rows
    # -> two 128-row grid steps, the second block partially out of bounds ---
    B2 = 200
    x2 = jax.random.normal(k_x2, (B2, INPUT_SIZE), jnp.float32)
    ref2 = mlp_reference(x2, params)

    out2_f32 = jax.block_until_ready(
        mlp_forward(x2, params, compute_dtype=jnp.float32))
    assert out2_f32.shape == (B2, 1), out2_f32.shape
    assert jnp.allclose(out2_f32, ref2, atol=1e-5, rtol=1e-5), (out2_f32, ref2)

    out2_bf16 = jax.block_until_ready(mlp_forward(x2, params))
    assert out2_bf16.shape == (B2, 1), out2_bf16.shape
    assert jnp.allclose(out2_bf16, ref2, atol=2e-2, rtol=2e-2), (out2_bf16, ref2)

    print("KERNEL_OK")
</pallas_src>

<mosaic_0001>
module attributes {stable_mosaic.version = 11 : i64} {
  func.func @_mlp_kernel(%arg0: i32, %arg1: memref<8x32xf32, #tpu.memory_space<vmem>>, %arg2: memref<32x256xf32, #tpu.memory_space<vmem>>, %arg3: memref<1x256xf32, #tpu.memory_space<vmem>>, %arg4: memref<256x128xf32, #tpu.memory_space<vmem>>, %arg5: memref<1x128xf32, #tpu.memory_space<vmem>>, %arg6: memref<1x128xf32, #tpu.memory_space<vmem>>, %arg7: memref<1x1xf32, #tpu.memory_space<vmem>>, %arg8: memref<1x1x8xf32, #tpu.memory_space<vmem>>) attributes {dimension_semantics = [#tpu.dimension_semantics<parallel>], iteration_bounds = array<i64: 1>, scalar_prefetch = 0 : i64, scratch_operands = 0 : i64, tpu.core_type = #tpu.core_type<tc>, window_params = [{transform_indices = @transform_0, window_bounds = array<i64: 8, 32>}, {pipeline_mode = #tpu.pipeline_mode<synchronous>, transform_indices = @transform_1, window_bounds = array<i64: 32, 256>}, {pipeline_mode = #tpu.pipeline_mode<synchronous>, transform_indices = @transform_2, window_bounds = array<i64: 1, 256>}, {pipeline_mode = #tpu.pipeline_mode<synchronous>, transform_indices = @transform_3, window_bounds = array<i64: 256, 128>}, {pipeline_mode = #tpu.pipeline_mode<synchronous>, transform_indices = @transform_4, window_bounds = array<i64: 1, 128>}, {pipeline_mode = #tpu.pipeline_mode<synchronous>, transform_indices = @transform_5, window_bounds = array<i64: 1, 128>}, {pipeline_mode = #tpu.pipeline_mode<synchronous>, transform_indices = @transform_6, window_bounds = array<i64: 1, 1>}, {transform_indices = @transform_7, window_bounds = array<i64: 1, 1, 8>}]} {
    %c0 = arith.constant 0 : index
    %c0_0 = arith.constant 0 : index
    %0 = vector.load %arg1[%c0, %c0_0] : memref<8x32xf32, #tpu.memory_space<vmem>>, vector<8x32xf32>
    %c0_1 = arith.constant 0 : index
    %c0_2 = arith.constant 0 : index
    %1 = vector.load %arg2[%c0_1, %c0_2] : memref<32x256xf32, #tpu.memory_space<vmem>>, vector<32x256xf32>
    %cst = arith.constant dense<0.000000e+00> : vector<8x256xf32>
    %2 = tpu.matmul %0, %1, %cst {dimension_numbers = #tpu.dot_dimension_numbers<[1], [0], [0], [1], [0, 0, 1, 1], [], []>} : vector<8x32xf32>, vector<32x256xf32>, vector<8x256xf32> -> vector<8x256xf32>
    %c0_3 = arith.constant 0 : index
    %c0_4 = arith.constant 0 : index
    %3 = vector.load %arg3[%c0_3, %c0_4] : memref<1x256xf32, #tpu.memory_space<vmem>>, vector<1x256xf32>
    %4 = vector.broadcast %3 : vector<1x256xf32> to vector<8x256xf32>
    %5 = arith.addf %2, %4 : vector<8x256xf32>
    %cst_5 = arith.constant 0.000000e+00 : f32
    %6 = vector.broadcast %cst_5 : f32 to vector<8x256xf32>
    %7 = arith.maximumf %5, %6 : vector<8x256xf32>
    %c0_6 = arith.constant 0 : index
    %c0_7 = arith.constant 0 : index
    %8 = vector.load %arg4[%c0_6, %c0_7] : memref<256x128xf32, #tpu.memory_space<vmem>>, vector<256x128xf32>
    %cst_8 = arith.constant dense<0.000000e+00> : vector<8x128xf32>
    %9 = tpu.matmul %7, %8, %cst_8 {dimension_numbers = #tpu.dot_dimension_numbers<[1], [0], [0], [1], [0, 0, 1, 1], [], []>} : vector<8x256xf32>, vector<256x128xf32>, vector<8x128xf32> -> vector<8x128xf32>
    %c0_9 = arith.constant 0 : index
    %c0_10 = arith.constant 0 : index
    %10 = vector.load %arg5[%c0_9, %c0_10] : memref<1x128xf32, #tpu.memory_space<vmem>>, vector<1x128xf32>
    %11 = vector.broadcast %10 : vector<1x128xf32> to vector<8x128xf32>
    %12 = arith.addf %9, %11 : vector<8x128xf32>
    %cst_11 = arith.constant 0.000000e+00 : f32
    %13 = vector.broadcast %cst_11 : f32 to vector<8x128xf32>
    %14 = arith.maximumf %12, %13 : vector<8x128xf32>
    %c0_12 = arith.constant 0 : index
    %c0_13 = arith.constant 0 : index
    %15 = vector.load %arg6[%c0_12, %c0_13] : memref<1x128xf32, #tpu.memory_space<vmem>>, vector<1x128xf32>
    %cst_14 = arith.constant dense<0.000000e+00> : vector<1x8xf32>
    %16 = tpu.matmul %15, %14, %cst_14 {dimension_numbers = #tpu.dot_dimension_numbers<[1], [1], [0], [0], [0, 0, 1, 0], [], []>} : vector<1x128xf32>, vector<8x128xf32>, vector<1x8xf32> -> vector<1x8xf32>
    %c0_15 = arith.constant 0 : index
    %c0_16 = arith.constant 0 : index
    %17 = vector.load %arg7[%c0_15, %c0_16] : memref<1x1xf32, #tpu.memory_space<vmem>>, vector<1x1xf32>
    %18 = vector.broadcast %17 : vector<1x1xf32> to vector<1x8xf32>
    %19 = arith.addf %16, %18 : vector<1x8xf32>
    %20 = arith.negf %19 : vector<1x8xf32>
    %21 = math.exp %20 : vector<1x8xf32>
    %cst_17 = arith.constant 1.000000e+00 : f32
    %22 = vector.broadcast %cst_17 : f32 to vector<1x8xf32>
    %23 = arith.addf %22, %21 : vector<1x8xf32>
    %24 = arith.divf %22, %23 : vector<1x8xf32>
    %c0_18 = arith.constant 0 : index
    %c0_19 = arith.constant 0 : index
    %c0_20 = arith.constant 0 : index
    %25 = vector.load %arg8[%c0_18, %c0_19, %c0_20] : memref<1x1x8xf32, #tpu.memory_space<vmem>>, vector<1x1x8xf32>
    %26 = vector.shape_cast %25 : vector<1x1x8xf32> to vector<1x8xf32>
    %27 = vector.shape_cast %24 : vector<1x8xf32> to vector<1x1x8xf32>
    tpu.vector_store %arg8[%c0_18, %c0_19, %c0_20], %27 {strides = array<i32>} : memref<1x1x8xf32, #tpu.memory_space<vmem>>, vector<1x1x8xf32>,
    return
  }
  func.func @transform_0(%arg0: i32) -> (i32, i32) {
    %c0_i32 = arith.constant 0 : i32
    %c0_i32_0 = arith.constant 0 : i32
    return %arg0, %c0_i32 : i32, i32
  }
  func.func @transform_1(%arg0: i32) -> (i32, i32) {
    %c0_i32 = arith.constant 0 : i32
    %c0_i32_0 = arith.constant 0 : i32
    %c0_i32_1 = arith.constant 0 : i32
    return %c0_i32, %c0_i32_0 : i32, i32
  }
  func.func @transform_2(%arg0: i32) -> (i32, i32) {
    %c0_i32 = arith.constant 0 : i32
    %c0_i32_0 = arith.constant 0 : i32
    %c0_i32_1 = arith.constant 0 : i32
    return %c0_i32, %c0_i32_0 : i32, i32
  }
  func.func @transform_3(%arg0: i32) -> (i32, i32) {
    %c0_i32 = arith.constant 0 : i32
    %c0_i32_0 = arith.constant 0 : i32
    %c0_i32_1 = arith.constant 0 : i32
    return %c0_i32, %c0_i32_0 : i32, i32
  }
  func.func @transform_4(%arg0: i32) -> (i32, i32) {
    %c0_i32 = arith.constant 0 : i32
    %c0_i32_0 = arith.constant 0 : i32
    %c0_i32_1 = arith.constant 0 : i32
    return %c0_i32, %c0_i32_0 : i32, i32
  }
  func.func @transform_5(%arg0: i32) -> (i32, i32) {
    %c0_i32 = arith.constant 0 : i32
    %c0_i32_0 = arith.constant 0 : i32
    %c0_i32_1 = arith.constant 0 : i32
    return %c0_i32, %c0_i32_0 : i32, i32
  }
  func.func @transform_6(%arg0: i32) -> (i32, i32) {
    %c0_i32 = arith.constant 0 : i32
    %c0_i32_0 = arith.constant 0 : i32
    %c0_i32_1 = arith.constant 0 : i32
    return %c0_i32, %c0_i32_0 : i32, i32
  }
  func.func @transform_7(%arg0: i32) -> (i32, i32, i32) {
    %c0_i32 = arith.constant 0 : i32
    %c0_i32_0 = arith.constant 0 : i32
    %c0_i32_1 = arith.constant 0 : i32
    return %arg0, %c0_i32, %c0_i32_0 : i32, i32, i32
  }
}

</mosaic_0001>

<llo_original>
// kernel: mlp_forward.1
$region0: #{mlp_forward.1}
  #allocation0 [shape = 'u32[]', space=smem, size = 0x4, offset = 0x4, fixed_abs, tag = 'smem constant byte address 0x4 - core index']
  #allocation1 [shape = 'u32[144,128]{1,0:T(1,128)}', space=vmem, size = 0x12000, scoped, tag = 'internal scratch']
  #allocation2 [shape = 'f32[1,1]{1,0:T(1,128)S(1)}', space=vmem, size = 0x200, scoped, tag = 'scoped memory for mlp_forward.1']
  %s0 = inlined_call_operand.vmem [shape: f32[8,32], index: 0, kind: input, shape index: {}]
  %s1 = inlined_call_operand.vmem [shape: f32[32,256], index: 1, kind: input, shape index: {}]
  %s2 = inlined_call_operand.vmem [shape: f32[1,256], index: 2, kind: input, shape index: {}]
  %s3 = inlined_call_operand.vmem [shape: f32[256,128], index: 3, kind: input, shape index: {}]
  %s4 = inlined_call_operand.vmem [shape: f32[1,128], index: 4, kind: input, shape index: {}]
  %s5 = inlined_call_operand.vmem [shape: f32[1,128], index: 5, kind: input, shape index: {}]
  %s6 = inlined_call_operand.<no memory space> [shape: f32[1,1], index: 6, kind: input, shape index: {}]
  %s7 = inlined_call_operand.hbm [shape: f32[1,1,8], index: 7, kind: output, shape index: {}]
  %s8 = sld [smem:[#allocation0]]
  $region38: #{mlp_forward.1} parent=0
    _
  %s10 = ssub.s32 1, %s8
  %s11 = scalar_select 0, %s10, %s8
  %v12 = vstv %s6
  %13 = vst [vmem:[#allocation2] sm:$0x1] %v12
  $region1: #{mlp_forward.1} parent=0
    #allocation3 [shape = 'u8[512]{0}', space=vmem, size = 0x400, scoped, tag = 'output window, operand 0, single buffered']
    #allocation4 [shape = 's32[1]{0}', space=sflag, size = 0x4, scoped, tag = 'scoped memory for mlp_forward.1']
    %14 = vsyncpa [#allocation4], 0
    // Predicated region
    $region2: #{mlp_forward.1} parent=1 // pred_check
      _
    $region3: #{mlp_forward.1} parent=1 // pred_check_branch
      %16 = sbr.rel (0) target = $region5
    $region4: #{mlp_forward.1} parent=1 // pred_region
      _
    $region5: #{mlp_forward.1} parent=1 // pred_fallthru
      _
    // Predicated region
    $region6: #{mlp_forward.1} parent=1 // pred_check
      _
    $region7: #{mlp_forward.1} parent=1 // pred_check_branch
      %18 = sbr.rel (0) target = $region9
    $region8: #{mlp_forward.1} parent=1 // pred_region
      _
    $region9: #{mlp_forward.1} parent=1 // pred_fallthru
      _
    // Predicated region
    $region10: #{mlp_forward.1} parent=1 // pred_check
      _
    $region11: #{mlp_forward.1} parent=1 // pred_check_branch
      %20 = sbr.rel (0) target = $region13
    $region12: #{mlp_forward.1} parent=1 // pred_region
      _
    $region13: #{mlp_forward.1} parent=1 // pred_fallthru
      _
    // Predicated region
    $region14: #{mlp_forward.1} parent=1 // pred_check
      _
    $region15: #{mlp_forward.1} parent=1 // pred_check_branch
      %22 = sbr.rel (0) target = $region17
    $region16: #{mlp_forward.1} parent=1 // pred_region
      _
    $region17: #{mlp_forward.1} parent=1 // pred_fallthru
      _
    // Predicated region
    $region18: #{mlp_forward.1} parent=1 // pred_check
      _
    $region19: #{mlp_forward.1} parent=1 // pred_check_branch
      %24 = sbr.rel (0) target = $region21
    $region20: #{mlp_forward.1} parent=1 // pred_region
      _
    $region21: #{mlp_forward.1} parent=1 // pred_fallthru
      _
    // Predicated region
    $region22: #{mlp_forward.1} parent=1 // pred_check
      _
    $region23: #{mlp_forward.1} parent=1 // pred_check_branch
      %26 = sbr.rel (0) target = $region25
    $region24: #{mlp_forward.1} parent=1 // pred_region
      _
    $region25: #{mlp_forward.1} parent=1 // pred_fallthru
      _
    // Predicated region
    $region26: #{mlp_forward.1} parent=1 // pred_check
      _
    $region27: #{mlp_forward.1} parent=1 // pred_check_branch
      %28 = sbr.rel (0) target = $region29
    $region28: #{mlp_forward.1} parent=1 // pred_region
      _
    $region29: #{mlp_forward.1} parent=1 // pred_fallthru
      _
    %v29 = vld [vmem:[%s0] sm:$0xff]
    %v30 = vld [vmem:[%s1] sm:$0xff]
    %v31 = vld [vmem:[%s1 + $0x8] sm:$0xff]
    %v32 = vld [vmem:[%s1 + $0x10] sm:$0xff]
    %v33 = vld [vmem:[%s1 + $0x18] sm:$0xff]
    %v34 = vld [vmem:[%s1 + $0x20] sm:$0xff]
    %v35 = vld [vmem:[%s1 + $0x28] sm:$0xff]
    %v36 = vld [vmem:[%s1 + $0x30] sm:$0xff]
    %v37 = vld [vmem:[%s1 + $0x38] sm:$0xff]
    %v38 = vld [vmem:[%s2] sm:$0x3]
    %v40 = vlaneseq
    %v41 = vshrl.u32 %v40, 7
    %v42 = vsub.s32 0, %v41
    %v43 = vrot.slane %v38, %v42
    %v44 = vlaneseq
    %v45 = vshrl.u32 %v44, 7
    %v46 = vsub.s32 1, %v45
    %v47 = vrot.slane %v38, %v46
    %vm50 = vcmask 261120
    %v52 = vsel %vm50, %v29, 0
    %54 = vmatprep.subr.mxu0 %v31
    %55 = vmatpush1.msra.mxu0 %v30
    %56 = vmatprep.subr.mxu0 %v33
    %57 = vmatpush1.msra.mxu0 %v32
    %58 = vmatprep.subr.mxu0 %v35
    %59 = vmatpush1.msra.mxu0 %v34
    %60 = vmatprep.subr.mxu0 %v37
    %61 = vmatpush1.msra.mxu0 %v36
    %62 = vmatprep.subr.mxu0 0.0
    %63 = vmatpush1.msra.mxu0 0.0
    %64 = vmatprep.subr.mxu0 0.0
    %65 = vmatpush1.msra.mxu0 0.0
    %66 = vmatprep.subr.mxu0 0.0
    %67 = vmatpush1.msra.mxu0 0.0
    %68 = vmatprep.subr.mxu0 0.0
    %69 = vmatpush1.msra.mxu0 0.0
    %70 = vmatprep.subr.mxu0 0.0
    %71 = vmatpush1.msra.mxu0 0.0
    %72 = vmatprep.subr.mxu0 0.0
    %73 = vmatpush1.msra.mxu0 0.0
    %74 = vmatprep.subr.mxu0 0.0
    %75 = vmatpush1.msra.mxu0 0.0
    %76 = vmatprep.subr.mxu0 0.0
    %77 = vmatpush1.msra.mxu0 0.0
    %78 = vmatprep.subr.mxu0 0.0
    %79 = vmatpush1.msra.mxu0 0.0
    %80 = vmatprep.subr.mxu0 0.0
    %81 = vmatpush1.msra.mxu0 0.0
    %82 = vmatprep.subr.mxu0 0.0
    %83 = vmatpush1.msra.mxu0 0.0
    %84 = vmatprep.subr.mxu0 0.0
    %85 = vmatpush1.msra.mxu0 0.0
    %86 = vmatprep.subr.mxu0 0.0
    %87 = vmatpush1.msra.mxu0 0.0
    %88 = vmatprep.subr.mxu0 0.0
    %89 = vmatpush1.msra.mxu0 0.0
    %90 = vmatprep.subr.mxu0 0.0
    %91 = vmatpush1.msra.mxu0 0.0
    %92 = vmatprep.subr.mxu0 0.0
    %93 = vmatpush1.msra.mxu0 0.0
    %94 = vmatprep.subr.mxu0 0.0
    %95 = vmatpush1.msra.mxu0 0.0
    %96 = vmatprep.subr.mxu0 0.0
    %97 = vmatpush1.msra.mxu0 0.0
    %98 = vmatprep.subr.mxu0 0.0
    %99 = vmatpush1.msra.mxu0 0.0
    %100 = vmatprep.subr.mxu0 0.0
    %101 = vmatpush1.msra.mxu0 0.0
    %102 = vmatprep.subr.mxu0 0.0
    %103 = vmatpush1.msra.mxu0 0.0
    %104 = vmatprep.subr.mxu0 0.0
    %105 = vmatpush1.msra.mxu0 0.0
    %106 = vmatprep.subr.mxu0 0.0
    %107 = vmatpush1.msra.mxu0 0.0
    %108 = vmatprep.subr.mxu0 0.0
    %109 = vmatpush1.msra.mxu0 0.0
    %110 = vmatprep.subr.mxu0 0.0
    %111 = vmatpush1.msra.mxu0 0.0
    %112 = vmatprep.subr.mxu0 0.0
    %113 = vmatpush1.msra.mxu0 0.0
    %114 = vmatprep.subr.mxu0 0.0
    %115 = vmatpush1.msra.mxu0 0.0
    %116 = vmatprep.subr.mxu0 0.0
    %117 = vmatpush1.msra.mxu0 0.0
    %118 = vmatprep.mubr.f32.mxu0 0.0
    %119 = vmatmul.mubr.f32.gmra.mrb[0].mxu0 %v52
    %v120 = vpop.f32.mrb[0].mxu0
    %v121 = vadd.f32 %v43, %v120
    %v122 = vpop.f32.mrb[0].mxu0
    %v123 = vadd.f32 %v47, %v122
    %124 = vdwg.mxu0
    %v125 = vmax.f32 %v121, 0.0
    %v126 = vmax.f32 %v123, 0.0
    %v127 = vld [vmem:[%s3] sm:$0xff]
    %v128 = vld [vmem:[%s3 + $0x8] sm:$0xff]
    %v129 = vld [vmem:[%s3 + $0x10] sm:$0xff]
    %v130 = vld [vmem:[%s3 + $0x18] sm:$0xff]
    %v131 = vld [vmem:[%s3 + $0x20] sm:$0xff]
    %v132 = vld [vmem:[%s3 + $0x28] sm:$0xff]
    %v133 = vld [vmem:[%s3 + $0x30] sm:$0xff]
    %v134 = vld [vmem:[%s3 + $0x38] sm:$0xff]
    %v135 = vld [vmem:[%s3 + $0x40] sm:$0xff]
    %v136 = vld [vmem:[%s3 + $0x48] sm:$0xff]
    %v137 = vld [vmem:[%s3 + $0x50] sm:$0xff]
    %v138 = vld [vmem:[%s3 + $0x58] sm:$0xff]
    %v139 = vld [vmem:[%s3 + $0x60] sm:$0xff]
    %v140 = vld [vmem:[%s3 + $0x68] sm:$0xff]
    %v141 = vld [vmem:[%s3 + $0x70] sm:$0xff]
    %v142 = vld [vmem:[%s3 + $0x78] sm:$0xff]
    %v143 = vld [vmem:[%s3 + $0x80] sm:$0xff]
    %v144 = vld [vmem:[%s3 + $0x88] sm:$0xff]
    %v145 = vld [vmem:[%s3 + $0x90] sm:$0xff]
    %v146 = vld [vmem:[%s3 + $0x98] sm:$0xff]
    %v147 = vld [vmem:[%s3 + $0xa0] sm:$0xff]
    %v148 = vld [vmem:[%s3 + $0xa8] sm:$0xff]
    %v149 = vld [vmem:[%s3 + $0xb0] sm:$0xff]
    %v150 = vld [vmem:[%s3 + $0xb8] sm:$0xff]
    %v151 = vld [vmem:[%s3 + $0xc0] sm:$0xff]
    %v152 = vld [vmem:[%s3 + $0xc8] sm:$0xff]
    %v153 = vld [vmem:[%s3 + $0xd0] sm:$0xff]
    %v154 = vld [vmem:[%s3 + $0xd8] sm:$0xff]
    %v155 = vld [vmem:[%s3 + $0xe0] sm:$0xff]
    %v156 = vld [vmem:[%s3 + $0xe8] sm:$0xff]
    %v157 = vld [vmem:[%s3 + $0xf0] sm:$0xff]
    %v158 = vld [vmem:[%s3 + $0xf8] sm:$0xff]
    %v159 = vld [vmem:[%s4] sm:$0x1]
    %v161 = vlaneseq
    %v162 = vshrl.u32 %v161, 7
    %v163 = vsub.s32 0, %v162
    %v164 = vrot.slane %v159, %v163
    %166 = vmatprep.subr.mxu0 0.0
    %167 = vmatpush1.msra.mxu0 %v127
    %168 = vmatprep.subr.mxu0 0.0
    %169 = vmatpush1.msra.mxu0 %v128
    %170 = vmatprep.subr.mxu0 0.0
    %171 = vmatpush1.msra.mxu0 %v129
    %172 = vmatprep.subr.mxu0 0.0
    %173 = vmatpush1.msra.mxu0 %v130
    %174 = vmatprep.subr.mxu0 0.0
    %175 = vmatpush1.msra.mxu0 %v131
    %176 = vmatprep.subr.mxu0 0.0
    %177 = vmatpush1.msra.mxu0 %v132
    %178 = vmatprep.subr.mxu0 0.0
    %179 = vmatpush1.msra.mxu0 %v133
    %180 = vmatprep.subr.mxu0 0.0
    %181 = vmatpush1.msra.mxu0 %v134
    %182 = vmatprep.subr.mxu0 0.0
    %183 = vmatpush1.msra.mxu0 %v135
    %184 = vmatprep.subr.mxu0 0.0
    %185 = vmatpush1.msra.mxu0 %v136
    %186 = vmatprep.subr.mxu0 0.0
    %187 = vmatpush1.msra.mxu0 %v137
    %188 = vmatprep.subr.mxu0 0.0
    %189 = vmatpush1.msra.mxu0 %v138
    %190 = vmatprep.subr.mxu0 0.0
    %191 = vmatpush1.msra.mxu0 %v139
    %192 = vmatprep.subr.mxu0 0.0
    %193 = vmatpush1.msra.mxu0 %v140
    %194 = vmatprep.subr.mxu0 0.0
    %195 = vmatpush1.msra.mxu0 %v141
    %196 = vmatprep.subr.mxu0 0.0
    %197 = vmatpush1.msra.mxu0 %v142
    %198 = vmatprep.subr.mxu0 0.0
    %199 = vmatpush1.msra.mxu0 %v143
    %200 = vmatprep.subr.mxu0 0.0
    %201 = vmatpush1.msra.mxu0 %v144
    %202 = vmatprep.subr.mxu0 0.0
    %203 = vmatpush1.msra.mxu0 %v145
    %204 = vmatprep.subr.mxu0 0.0
    %205 = vmatpush1.msra.mxu0 %v146
    %206 = vmatprep.subr.mxu0 0.0
    %207 = vmatpush1.msra.mxu0 %v147
    %208 = vmatprep.subr.mxu0 0.0
    %209 = vmatpush1.msra.mxu0 %v148
    %210 = vmatprep.subr.mxu0 0.0
    %211 = vmatpush1.msra.mxu0 %v149
    %212 = vmatprep.subr.mxu0 0.0
    %213 = vmatpush1.msra.mxu0 %v150
    %214 = vmatprep.subr.mxu0 0.0
    %215 = vmatpush1.msra.mxu0 %v151
    %216 = vmatprep.subr.mxu0 0.0
    %217 = vmatpush1.msra.mxu0 %v152
    %218 = vmatprep.subr.mxu0 0.0
    %219 = vmatpush1.msra.mxu0 %v153
    %220 = vmatprep.subr.mxu0 0.0
    %221 = vmatpush1.msra.mxu0 %v154
    %222 = vmatprep.subr.mxu0 0.0
    %223 = vmatpush1.msra.mxu0 %v155
    %224 = vmatprep.subr.mxu0 0.0
    %225 = vmatpush1.msra.mxu0 %v156
    %226 = vmatprep.subr.mxu0 0.0
    %227 = vmatpush1.msra.mxu0 %v157
    %228 = vmatprep.subr.mxu0 0.0
    %229 = vmatpush1.msra.mxu0 %v158
    %230 = vmatprep.mubr.f32.mxu0 %v126
    %231 = vmatmul.mubr.f32.gmra.mrb[0].mxu0 %v125
    %v232 = vpop.f32.mrb[0].mxu0
    %v233 = vadd.f32 %v164, %v232
    %v234 = vpop.f32.mrb[0].mxu0
    %235 = vdwg.mxu0
    %v236 = vmax.f32 %v233, 0.0
    %v237 = vld [vmem:[%s5] sm:$0x1]
    %v238 = vld [vmem:[#allocation2] sm:$0x1]
    %240 = vset.pattern.permute.xlu0 0
    %241 = vperm.xlu0 %240, %v238
    %v242 = vpop.permute.xlu0 %241
    %v244 = vlaneseq
    %v245 = vshrl.u32 %v244, 7
    %v246 = vsub.s32 0, %v245
    %v247 = vrot.slane %v242, %v246
    %248 = vmatprep.subr.mxu0 0.0
    %249 = vmatpush1.xpose.msra.mxu0 %v236
    %250 = vmatprep.subr.mxu0 0.0
    %251 = vmatpush1.xpose.msra.mxu0 0.0
    %252 = vmatprep.subr.mxu0 0.0
    %253 = vmatpush1.xpose.msra.mxu0 0.0
    %254 = vmatprep.subr.mxu0 0.0
    %255 = vmatpush1.xpose.msra.mxu0 0.0
    %256 = vmatprep.subr.mxu0 0.0
    %257 = vmatpush1.xpose.msra.mxu0 0.0
    %258 = vmatprep.subr.mxu0 0.0
    %259 = vmatpush1.xpose.msra.mxu0 0.0
    %260 = vmatprep.subr.mxu0 0.0
    %261 = vmatpush1.xpose.msra.mxu0 0.0
    %262 = vmatprep.subr.mxu0 0.0
    %263 = vmatpush1.xpose.msra.mxu0 0.0
    %264 = vmatprep.subr.mxu0 0.0
    %265 = vmatpush1.xpose.msra.mxu0 0.0
    %266 = vmatprep.subr.mxu0 0.0
    %267 = vmatpush1.xpose.msra.mxu0 0.0
    %268 = vmatprep.subr.mxu0 0.0
    %269 = vmatpush1.xpose.msra.mxu0 0.0
    %270 = vmatprep.subr.mxu0 0.0
    %271 = vmatpush1.xpose.msra.mxu0 0.0
    %272 = vmatprep.subr.mxu0 0.0
    %273 = vmatpush1.xpose.msra.mxu0 0.0
    %274 = vmatprep.subr.mxu0 0.0
    %275 = vmatpush1.xpose.msra.mxu0 0.0
    %276 = vmatprep.subr.mxu0 0.0
    %277 = vmatpush1.xpose.msra.mxu0 0.0
    %278 = vmatprep.subr.mxu0 0.0
    %279 = vmatpush1.xpose.msra.mxu0 0.0
    %280 = vmatprep.subr.mxu0 0.0
    %281 = vmatpush1.xpose.msra.mxu0 0.0
    %282 = vmatprep.subr.mxu0 0.0
    %283 = vmatpush1.xpose.msra.mxu0 0.0
    %284 = vmatprep.subr.mxu0 0.0
    %285 = vmatpush1.xpose.msra.mxu0 0.0
    %286 = vmatprep.subr.mxu0 0.0
    %287 = vmatpush1.xpose.msra.mxu0 0.0
    %288 = vmatprep.subr.mxu0 0.0
    %289 = vmatpush1.xpose.msra.mxu0 0.0
    %290 = vmatprep.subr.mxu0 0.0
    %291 = vmatpush1.xpose.msra.mxu0 0.0
    %292 = vmatprep.subr.mxu0 0.0
    %293 = vmatpush1.xpose.msra.mxu0 0.0
    %294 = vmatprep.subr.mxu0 0.0
    %295 = vmatpush1.xpose.msra.mxu0 0.0
    %296 = vmatprep.subr.mxu0 0.0
    %297 = vmatpush1.xpose.msra.mxu0 0.0
    %298 = vmatprep.subr.mxu0 0.0
    %299 = vmatpush1.xpose.msra.mxu0 0.0
    %300 = vmatprep.subr.mxu0 0.0
    %301 = vmatpush1.xpose.msra.mxu0 0.0
    %302 = vmatprep.subr.mxu0 0.0
    %303 = vmatpush1.xpose.msra.mxu0 0.0
    %304 = vmatprep.subr.mxu0 0.0
    %305 = vmatpush1.xpose.msra.mxu0 0.0
    %306 = vmatprep.subr.mxu0 0.0
    %307 = vmatpush1.xpose.msra.mxu0 0.0
    %308 = vmatprep.subr.mxu0 0.0
    %309 = vmatpush1.xpose.msra.mxu0 0.0
    %310 = vmatprep.subr.mxu0 0.0
    %311 = vmatpush1.xpose.msra.mxu0 0.0
    %312 = vmatprep.mubr.f32.mxu0 0.0
    %313 = vmatmul.mubr.f32.gmra.mrb[0].mxu0 %v237
    %v314 = vpop.f32.mrb[0].mxu0
    %v315 = vadd.f32 %v247, %v314
    %v316 = vpop.f32.mrb[0].mxu0
    %317 = vdwg.mxu0
    %v318 = vxor.u32 %v315, 2147483648
    %v319 = vmul.f32 %v318, 1.442695
    %v320 = vpow.pop %v319
    %v321 = vadd.f32 %v320, 1.0
    %v322 = vrcp.pop %v321
    %v323 = vmul.f32 1.0, %v322
    %vm324 = vcmask 57344
    %325 = vst.msk [vmem:[#allocation3] sm:$0x1] %vm324, %v323
    // Predicated region
    $region30: #{mlp_forward.1} parent=1 // pred_check
      _
    $region31: #{mlp_forward.1} parent=1 // pred_check_branch
      %327 = sbr.rel (0) target = $region33
    $region32: #{mlp_forward.1} parent=1 // pred_region
      %s329 = ssub.s32 16, 16
      %330 = vsyncadd [#allocation4], %s329
      %s332 = sshll.u32 [#allocation3], 4
      %s333 = int_to_ptr.vmem [resolvable:$true] %s332
      %335 = dma.vmem_to_hbm [thread:$0]  %s333, 16, %s7, [#allocation4]
    $region33: #{mlp_forward.1} parent=1 // pred_fallthru
      _
    // Predicated region
    $region34: #{mlp_forward.1} parent=1 // pred_check
      _
    $region35: #{mlp_forward.1} parent=1 // pred_check_branch
      %337 = sbr.rel (0) target = $region37
    $region36: #{mlp_forward.1} parent=1 // pred_region
      %338 = dma.done [#allocation4], 16
    $region37: #{mlp_forward.1} parent=1 // pred_fallthru
      _
    %339 = vsyncpa [#allocation4], 1

</llo_original>
